<compile_context>
chip_gen: v7x
topology: tpu7x:2x2x1
jax: 0.10.0
libtpu: 0.0.40
codegen_flags: <defaults>
</compile_context>

<pallas_src>
import functools

import jax
import jax.numpy as jnp
from jax.experimental import pallas as pl
from jax.experimental.pallas import tpu as pltpu


def _encoder_kernel(num_linear, *refs):
    """Whole-MLP kernel over one batch tile.

    refs layout (after functools.partial binds num_linear):
        x_ref, w_0..w_{L-1}, b_0..b_{L-1}, out_ref
    x_ref / w_i are bf16; biases are f32; matmuls accumulate in f32; tanh in f32.
    """
    x_ref = refs[0]
    w_refs = refs[1:1 + num_linear]
    b_refs = refs[1 + num_linear:1 + 2 * num_linear]
    out_ref = refs[1 + 2 * num_linear]

    h = x_ref[...]  # bf16 batch tile
    for i in range(num_linear):
        acc = jnp.dot(h.astype(jnp.bfloat16), w_refs[i][...],
                      preferred_element_type=jnp.float32)
        acc = acc + b_refs[i][...]          # (1, out) f32 bias broadcasts over batch
        if i < num_linear - 1:              # tanh after every Linear except the last
            acc = jnp.tanh(acc)             # f32 on EUP
        h = acc

    out_ref[...] = h.astype(out_ref.dtype)  # single lane-dense (TB, 2*out_dim) store


def encoder_forward(data, weights, biases, output_dim):
    """data: (B, input_dim); weights[i]: (in_i, out_i); biases[i]: (1, out_i) f32.

    Returns (mu, std), each (B, output_dim) f32.
    """
    num_linear = len(weights)
    B, input_dim = data.shape
    out_cols = 2 * output_dim
    assert weights[-1].shape[1] == out_cols

    # ---- batch tiling: biggest tile (multiple of 8 sublanes) up to 512 rows.
    # Budget: 2 (double-buffer) * TB * (input_dim + 2*out_dim) * {2,4}B + resident
    # weights must stay well inside the 32 MiB scoped VMEM default (v7x: 64 MiB phys).
    TB = min(512, ((B + 7) // 8) * 8)
    B_pad = ((B + TB - 1) // TB) * TB
    grid = (B_pad // TB,)

    # ---- dtype handling: bf16 weights + input tiles, f32 biases / accumulation.
    data_bf16 = data.astype(jnp.bfloat16)
    if B_pad != B:
        data_bf16 = jnp.pad(data_bf16, ((0, B_pad - B), (0, 0)))
    weights_bf16 = [w.astype(jnp.bfloat16) for w in weights]
    biases_f32 = [b.astype(jnp.float32) for b in biases]

    in_specs = [pl.BlockSpec((TB, input_dim), lambda i: (i, 0))]
    # Weights / biases: full blocks, constant index_map -> resident across grid steps.
    in_specs += [pl.BlockSpec(w.shape, lambda i: (0, 0)) for w in weights_bf16]
    in_specs += [pl.BlockSpec(b.shape, lambda i: (0, 0)) for b in biases_f32]

    out_specs = pl.BlockSpec((TB, out_cols), lambda i: (i, 0))
    out_shape = jax.ShapeDtypeStruct((B_pad, out_cols), jnp.float32)

    kernel = functools.partial(_encoder_kernel, num_linear)

    h = pl.pallas_call(
        kernel,
        grid=grid,
        in_specs=in_specs,
        out_specs=out_specs,
        out_shape=out_shape,
        compiler_params=pltpu.CompilerParams(
            dimension_semantics=("parallel",)),  # v7x: shard batch tiles across 2 TCs
    )(data_bf16, *weights_bf16, *biases_f32)

    h = h[:B]
    mu = h[:, :output_dim]
    std = h[:, output_dim:]  # raw split, as in the reference (no positivity transform)
    return mu, std


def init_encoder_params(key, input_dim, output_dim, hidden_dim, layer_num):
    """Matches utils.create_net + init_network_weights (Normal(0, 0.1) W, zero b)."""
    dims = [input_dim] + [hidden_dim] * (layer_num + 1) + [output_dim * 2]
    weights, biases = [], []
    for i in range(len(dims) - 1):
        key, sub = jax.random.split(key)
        # PyTorch Linear weight is (out, in); sample in that shape then transpose
        # so the kernel can do x @ W.
        w_pt = 0.1 * jax.random.normal(sub, (dims[i + 1], dims[i]), dtype=jnp.float32)
        weights.append(jnp.transpose(w_pt))
        biases.append(jnp.zeros((1, dims[i + 1]), dtype=jnp.float32))
    return weights, biases


if __name__ == "__main__":
    # Small shapes consistent with the module's forward (2-D input).
    batch = 8
    input_dim = 16
    hidden_dim = 32
    output_dim = 8
    layer_num = 2

    key = jax.random.PRNGKey(0)
    key, kdata = jax.random.split(key)
    data = jax.random.normal(kdata, (batch, input_dim), dtype=jnp.float32)

    weights, biases = init_encoder_params(key, input_dim, output_dim, hidden_dim, layer_num)

    mu, std = encoder_forward(data, weights, biases, output_dim)
    jax.block_until_ready((mu, std))

    # --- reference 1: same mixed precision as the kernel (bf16 matmuls, f32 accum) ---
    h = data.astype(jnp.bfloat16)
    w_bf16 = [w.astype(jnp.bfloat16) for w in weights]
    for i, (w, b) in enumerate(zip(w_bf16, biases)):
        h = jnp.dot(h.astype(jnp.bfloat16), w, preferred_element_type=jnp.float32) + b
        if i < len(weights) - 1:
            h = jnp.tanh(h)
    mu_ref, std_ref = h[:, :output_dim], h[:, output_dim:]
    assert jnp.allclose(mu, mu_ref, atol=1e-3), "mu mismatch (bf16 reference)"
    assert jnp.allclose(std, std_ref, atol=1e-3), "std mismatch (bf16 reference)"

    # --- reference 2: full f32 math (loose tolerance for the bf16 weight cast) ---
    h32 = data
    for i, (w, b) in enumerate(zip(weights, biases)):
        h32 = h32 @ w + b
        if i < len(weights) - 1:
            h32 = jnp.tanh(h32)
    assert jnp.allclose(mu, h32[:, :output_dim], atol=5e-2), "mu mismatch (f32 reference)"
    assert jnp.allclose(std, h32[:, output_dim:], atol=5e-2), "std mismatch (f32 reference)"
    assert mu.shape == (batch, output_dim) and std.shape == (batch, output_dim)

    print("KERNEL_OK")
</pallas_src>

<mosaic_0001>
module attributes {stable_mosaic.version = 11 : i64} {
  func.func @_encoder_kernel(%arg0: i32, %arg1: memref<8x16xbf16, #tpu.memory_space<vmem>>, %arg2: memref<16x32xbf16, #tpu.memory_space<vmem>>, %arg3: memref<32x32xbf16, #tpu.memory_space<vmem>>, %arg4: memref<32x32xbf16, #tpu.memory_space<vmem>>, %arg5: memref<32x16xbf16, #tpu.memory_space<vmem>>, %arg6: memref<1x32xf32, #tpu.memory_space<vmem>>, %arg7: memref<1x32xf32, #tpu.memory_space<vmem>>, %arg8: memref<1x32xf32, #tpu.memory_space<vmem>>, %arg9: memref<1x16xf32, #tpu.memory_space<vmem>>, %arg10: memref<8x16xf32, #tpu.memory_space<vmem>>) attributes {dimension_semantics = [#tpu.dimension_semantics<parallel>], iteration_bounds = array<i64: 1>, scalar_prefetch = 0 : i64, scratch_operands = 0 : i64, tpu.core_type = #tpu.core_type<tc>, window_params = [{transform_indices = @transform_0, window_bounds = array<i64: 8, 16>}, {pipeline_mode = #tpu.pipeline_mode<synchronous>, transform_indices = @transform_1, window_bounds = array<i64: 16, 32>}, {pipeline_mode = #tpu.pipeline_mode<synchronous>, transform_indices = @transform_2, window_bounds = array<i64: 32, 32>}, {pipeline_mode = #tpu.pipeline_mode<synchronous>, transform_indices = @transform_3, window_bounds = array<i64: 32, 32>}, {pipeline_mode = #tpu.pipeline_mode<synchronous>, transform_indices = @transform_4, window_bounds = array<i64: 32, 16>}, {pipeline_mode = #tpu.pipeline_mode<synchronous>, transform_indices = @transform_5, window_bounds = array<i64: 1, 32>}, {pipeline_mode = #tpu.pipeline_mode<synchronous>, transform_indices = @transform_6, window_bounds = array<i64: 1, 32>}, {pipeline_mode = #tpu.pipeline_mode<synchronous>, transform_indices = @transform_7, window_bounds = array<i64: 1, 32>}, {pipeline_mode = #tpu.pipeline_mode<synchronous>, transform_indices = @transform_8, window_bounds = array<i64: 1, 16>}, {transform_indices = @transform_9, window_bounds = array<i64: 8, 16>}]} {
    %c0 = arith.constant 0 : index
    %c0_0 = arith.constant 0 : index
    %0 = vector.load %arg1[%c0, %c0_0] : memref<8x16xbf16, #tpu.memory_space<vmem>>, vector<8x16xbf16>
    %c0_1 = arith.constant 0 : index
    %c0_2 = arith.constant 0 : index
    %1 = vector.load %arg2[%c0_1, %c0_2] : memref<16x32xbf16, #tpu.memory_space<vmem>>, vector<16x32xbf16>
    %cst = arith.constant dense<0.000000e+00> : vector<8x32xf32>
    %2 = tpu.matmul %0, %1, %cst {dimension_numbers = #tpu.dot_dimension_numbers<[1], [0], [0], [1], [0, 0, 1, 1], [], []>} : vector<8x16xbf16>, vector<16x32xbf16>, vector<8x32xf32> -> vector<8x32xf32>
    %c0_3 = arith.constant 0 : index
    %c0_4 = arith.constant 0 : index
    %3 = vector.load %arg6[%c0_3, %c0_4] : memref<1x32xf32, #tpu.memory_space<vmem>>, vector<1x32xf32>
    %4 = vector.broadcast %3 : vector<1x32xf32> to vector<8x32xf32>
    %5 = arith.addf %2, %4 : vector<8x32xf32>
    %6 = math.tanh %5 : vector<8x32xf32>
    %7 = arith.truncf %6 : vector<8x32xf32> to vector<8x32xbf16>
    %c0_5 = arith.constant 0 : index
    %c0_6 = arith.constant 0 : index
    %8 = vector.load %arg3[%c0_5, %c0_6] : memref<32x32xbf16, #tpu.memory_space<vmem>>, vector<32x32xbf16>
    %cst_7 = arith.constant dense<0.000000e+00> : vector<8x32xf32>
    %9 = tpu.matmul %7, %8, %cst_7 {dimension_numbers = #tpu.dot_dimension_numbers<[1], [0], [0], [1], [0, 0, 1, 1], [], []>} : vector<8x32xbf16>, vector<32x32xbf16>, vector<8x32xf32> -> vector<8x32xf32>
    %c0_8 = arith.constant 0 : index
    %c0_9 = arith.constant 0 : index
    %10 = vector.load %arg7[%c0_8, %c0_9] : memref<1x32xf32, #tpu.memory_space<vmem>>, vector<1x32xf32>
    %11 = vector.broadcast %10 : vector<1x32xf32> to vector<8x32xf32>
    %12 = arith.addf %9, %11 : vector<8x32xf32>
    %13 = math.tanh %12 : vector<8x32xf32>
    %14 = arith.truncf %13 : vector<8x32xf32> to vector<8x32xbf16>
    %c0_10 = arith.constant 0 : index
    %c0_11 = arith.constant 0 : index
    %15 = vector.load %arg4[%c0_10, %c0_11] : memref<32x32xbf16, #tpu.memory_space<vmem>>, vector<32x32xbf16>
    %cst_12 = arith.constant dense<0.000000e+00> : vector<8x32xf32>
    %16 = tpu.matmul %14, %15, %cst_12 {dimension_numbers = #tpu.dot_dimension_numbers<[1], [0], [0], [1], [0, 0, 1, 1], [], []>} : vector<8x32xbf16>, vector<32x32xbf16>, vector<8x32xf32> -> vector<8x32xf32>
    %c0_13 = arith.constant 0 : index
    %c0_14 = arith.constant 0 : index
    %17 = vector.load %arg8[%c0_13, %c0_14] : memref<1x32xf32, #tpu.memory_space<vmem>>, vector<1x32xf32>
    %18 = vector.broadcast %17 : vector<1x32xf32> to vector<8x32xf32>
    %19 = arith.addf %16, %18 : vector<8x32xf32>
    %20 = math.tanh %19 : vector<8x32xf32>
    %21 = arith.truncf %20 : vector<8x32xf32> to vector<8x32xbf16>
    %c0_15 = arith.constant 0 : index
    %c0_16 = arith.constant 0 : index
    %22 = vector.load %arg5[%c0_15, %c0_16] : memref<32x16xbf16, #tpu.memory_space<vmem>>, vector<32x16xbf16>
    %cst_17 = arith.constant dense<0.000000e+00> : vector<8x16xf32>
    %23 = tpu.matmul %21, %22, %cst_17 {dimension_numbers = #tpu.dot_dimension_numbers<[1], [0], [0], [1], [0, 0, 1, 1], [], []>} : vector<8x32xbf16>, vector<32x16xbf16>, vector<8x16xf32> -> vector<8x16xf32>
    %c0_18 = arith.constant 0 : index
    %c0_19 = arith.constant 0 : index
    %24 = vector.load %arg9[%c0_18, %c0_19] : memref<1x16xf32, #tpu.memory_space<vmem>>, vector<1x16xf32>
    %25 = vector.broadcast %24 : vector<1x16xf32> to vector<8x16xf32>
    %26 = arith.addf %23, %25 : vector<8x16xf32>
    %c0_20 = arith.constant 0 : index
    %c0_21 = arith.constant 0 : index
    %27 = vector.load %arg10[%c0_20, %c0_21] : memref<8x16xf32, #tpu.memory_space<vmem>>, vector<8x16xf32>
    tpu.vector_store %arg10[%c0_20, %c0_21], %26 {strides = array<i32>} : memref<8x16xf32, #tpu.memory_space<vmem>>, vector<8x16xf32>,
    return
  }
  func.func @transform_0(%arg0: i32) -> (i32, i32) {
    %c0_i32 = arith.constant 0 : i32
    %c0_i32_0 = arith.constant 0 : i32
    return %arg0, %c0_i32 : i32, i32
  }
  func.func @transform_1(%arg0: i32) -> (i32, i32) {
    %c0_i32 = arith.constant 0 : i32
    %c0_i32_0 = arith.constant 0 : i32
    %c0_i32_1 = arith.constant 0 : i32
    return %c0_i32, %c0_i32_0 : i32, i32
  }
  func.func @transform_2(%arg0: i32) -> (i32, i32) {
    %c0_i32 = arith.constant 0 : i32
    %c0_i32_0 = arith.constant 0 : i32
    %c0_i32_1 = arith.constant 0 : i32
    return %c0_i32, %c0_i32_0 : i32, i32
  }
  func.func @transform_3(%arg0: i32) -> (i32, i32) {
    %c0_i32 = arith.constant 0 : i32
    %c0_i32_0 = arith.constant 0 : i32
    %c0_i32_1 = arith.constant 0 : i32
    return %c0_i32, %c0_i32_0 : i32, i32
  }
  func.func @transform_4(%arg0: i32) -> (i32, i32) {
    %c0_i32 = arith.constant 0 : i32
    %c0_i32_0 = arith.constant 0 : i32
    %c0_i32_1 = arith.constant 0 : i32
    return %c0_i32, %c0_i32_0 : i32, i32
  }
  func.func @transform_5(%arg0: i32) -> (i32, i32) {
    %c0_i32 = arith.constant 0 : i32
    %c0_i32_0 = arith.constant 0 : i32
    %c0_i32_1 = arith.constant 0 : i32
    return %c0_i32, %c0_i32_0 : i32, i32
  }
  func.func @transform_6(%arg0: i32) -> (i32, i32) {
    %c0_i32 = arith.constant 0 : i32
    %c0_i32_0 = arith.constant 0 : i32
    %c0_i32_1 = arith.constant 0 : i32
    return %c0_i32, %c0_i32_0 : i32, i32
  }
  func.func @transform_7(%arg0: i32) -> (i32, i32) {
    %c0_i32 = arith.constant 0 : i32
    %c0_i32_0 = arith.constant 0 : i32
    %c0_i32_1 = arith.constant 0 : i32
    return %c0_i32, %c0_i32_0 : i32, i32
  }
  func.func @transform_8(%arg0: i32) -> (i32, i32) {
    %c0_i32 = arith.constant 0 : i32
    %c0_i32_0 = arith.constant 0 : i32
    %c0_i32_1 = arith.constant 0 : i32
    return %c0_i32, %c0_i32_0 : i32, i32
  }
  func.func @transform_9(%arg0: i32) -> (i32, i32) {
    %c0_i32 = arith.constant 0 : i32
    %c0_i32_0 = arith.constant 0 : i32
    return %arg0, %c0_i32 : i32, i32
  }
}

</mosaic_0001>

<llo_original>
// kernel: tpu_custom_call.1
$region0: #{tpu_custom_call.1}
  #allocation0 [shape = 'u32[]', space=smem, size = 0x4, offset = 0x4, fixed_abs, tag = 'smem constant byte address 0x4 - core index']
  #allocation1 [shape = 'u32[144,128]{1,0:T(1,128)}', space=vmem, size = 0x12000, scoped, tag = 'internal scratch']
  %s0 = inlined_call_operand.hbm [shape: bf16[8,16], index: 0, kind: input, shape index: {}]
  %s1 = inlined_call_operand.hbm [shape: bf16[16,32], index: 1, kind: input, shape index: {}]
  %s2 = inlined_call_operand.vmem [shape: bf16[32,32], index: 2, kind: input, shape index: {}]
  %s3 = inlined_call_operand.vmem [shape: bf16[32,32], index: 3, kind: input, shape index: {}]
  %s4 = inlined_call_operand.vmem [shape: bf16[32,16], index: 4, kind: input, shape index: {}]
  %s5 = inlined_call_operand.vmem [shape: f32[1,32], index: 5, kind: input, shape index: {}]
  %s6 = inlined_call_operand.vmem [shape: f32[1,32], index: 6, kind: input, shape index: {}]
  %s7 = inlined_call_operand.vmem [shape: f32[1,32], index: 7, kind: input, shape index: {}]
  %s8 = inlined_call_operand.vmem [shape: f32[1,16], index: 8, kind: input, shape index: {}]
  %s9 = inlined_call_operand.hbm [shape: f32[8,16], index: 9, kind: output, shape index: {}]
  %s10 = sld [smem:[#allocation0]]
  $region54: #{tpu_custom_call.1} parent=0
    _
  %s12 = ssub.s32 1, %s10
  %s13 = scalar_select 0, %s12, %s10
  $region1: #{tpu_custom_call.1} parent=0
    #allocation2 [shape = 'u8[2048]{0}', space=vmem, size = 0x800, scoped, tag = 'input window, operand 0, single buffered']
    #allocation3 [shape = 's32[1]{0}', space=sflag, size = 0x4, scoped, tag = 'scoped memory for tpu_custom_call.1']
    #allocation4 [shape = 's32[1]{0}', space=sflag, size = 0x4, scoped, tag = 'scoped memory for tpu_custom_call.1']
    #allocation5 [shape = 'u8[4096]{0}', space=vmem, size = 0x1000, scoped, tag = 'input window, operand 1, single buffered']
    #allocation6 [shape = 's32[1]{0}', space=sflag, size = 0x4, scoped, tag = 'scoped memory for tpu_custom_call.1']
    #allocation7 [shape = 'u8[4096]{0}', space=vmem, size = 0x1000, scoped, tag = 'output window, operand 0, single buffered']
    %14 = vsyncpa [#allocation3], 0
    %15 = vsyncpa [#allocation6], 0
    %16 = vsyncpa [#allocation4], 0
    // Predicated region
    $region2: #{tpu_custom_call.1} parent=1 // pred_check
      _
    $region3: #{tpu_custom_call.1} parent=1 // pred_check_branch
      %18 = sbr.rel (0) target = $region5
    $region4: #{tpu_custom_call.1} parent=1 // pred_region
      %s20 = ssub.s32 64, 64
      %21 = vsyncadd [#allocation3], %s20
      %s23 = sshll.u32 [#allocation2], 4
      %s24 = int_to_ptr.vmem [resolvable:$true] %s23
      %26 = dma.hbm_to_vmem [thread:$0]  %s0, 64, %s24, [#allocation3]
    $region5: #{tpu_custom_call.1} parent=1 // pred_fallthru
      _
    // Predicated region
    $region6: #{tpu_custom_call.1} parent=1 // pred_check
      _
    $region7: #{tpu_custom_call.1} parent=1 // pred_check_branch
      %28 = sbr.rel (0) target = $region9
    $region8: #{tpu_custom_call.1} parent=1 // pred_region
      %s30 = ssub.s32 128, 128
      %31 = vsyncadd [#allocation6], %s30
      %s32 = sshll.u32 [#allocation5], 4
      %s33 = int_to_ptr.vmem [resolvable:$true] %s32
      %38 = dma.hbm_to_vmem [thread:$0]  %s1, 128, %s33, [#allocation6], 64, 64, 4
    $region9: #{tpu_custom_call.1} parent=1 // pred_fallthru
      _
    // Predicated region
    $region10: #{tpu_custom_call.1} parent=1 // pred_check
      _
    $region11: #{tpu_custom_call.1} parent=1 // pred_check_branch
      %40 = sbr.rel (0) target = $region13
    $region12: #{tpu_custom_call.1} parent=1 // pred_region
      _
    $region13: #{tpu_custom_call.1} parent=1 // pred_fallthru
      _
    // Predicated region
    $region14: #{tpu_custom_call.1} parent=1 // pred_check
      _
    $region15: #{tpu_custom_call.1} parent=1 // pred_check_branch
      %42 = sbr.rel (0) target = $region17
    $region16: #{tpu_custom_call.1} parent=1 // pred_region
      _
    $region17: #{tpu_custom_call.1} parent=1 // pred_fallthru
      _
    // Predicated region
    $region18: #{tpu_custom_call.1} parent=1 // pred_check
      _
    $region19: #{tpu_custom_call.1} parent=1 // pred_check_branch
      %44 = sbr.rel (0) target = $region21
    $region20: #{tpu_custom_call.1} parent=1 // pred_region
      _
    $region21: #{tpu_custom_call.1} parent=1 // pred_fallthru
      _
    // Predicated region
    $region22: #{tpu_custom_call.1} parent=1 // pred_check
      _
    $region23: #{tpu_custom_call.1} parent=1 // pred_check_branch
      %46 = sbr.rel (0) target = $region25
    $region24: #{tpu_custom_call.1} parent=1 // pred_region
      _
    $region25: #{tpu_custom_call.1} parent=1 // pred_fallthru
      _
    // Predicated region
    $region26: #{tpu_custom_call.1} parent=1 // pred_check
      _
    $region27: #{tpu_custom_call.1} parent=1 // pred_check_branch
      %48 = sbr.rel (0) target = $region29
    $region28: #{tpu_custom_call.1} parent=1 // pred_region
      _
    $region29: #{tpu_custom_call.1} parent=1 // pred_fallthru
      _
    // Predicated region
    $region30: #{tpu_custom_call.1} parent=1 // pred_check
      _
    $region31: #{tpu_custom_call.1} parent=1 // pred_check_branch
      %50 = sbr.rel (0) target = $region33
    $region32: #{tpu_custom_call.1} parent=1 // pred_region
      _
    $region33: #{tpu_custom_call.1} parent=1 // pred_fallthru
      _
    // Predicated region
    $region34: #{tpu_custom_call.1} parent=1 // pred_check
      _
    $region35: #{tpu_custom_call.1} parent=1 // pred_check_branch
      %52 = sbr.rel (0) target = $region37
    $region36: #{tpu_custom_call.1} parent=1 // pred_region
      _
    $region37: #{tpu_custom_call.1} parent=1 // pred_fallthru
      _
    // Predicated region
    $region38: #{tpu_custom_call.1} parent=1 // pred_check
      _
    $region39: #{tpu_custom_call.1} parent=1 // pred_check_branch
      %54 = sbr.rel (0) target = $region41
    $region40: #{tpu_custom_call.1} parent=1 // pred_region
      %55 = dma.done [#allocation3], 64
    $region41: #{tpu_custom_call.1} parent=1 // pred_fallthru
      _
    // Predicated region
    $region42: #{tpu_custom_call.1} parent=1 // pred_check
      _
    $region43: #{tpu_custom_call.1} parent=1 // pred_check_branch
      %57 = sbr.rel (0) target = $region45
    $region44: #{tpu_custom_call.1} parent=1 // pred_region
      %58 = dma.done [#allocation6], 128
    $region45: #{tpu_custom_call.1} parent=1 // pred_fallthru
      _
    %v60 = vld [vmem:[#allocation2] sm:$0xf]
    %v61 = vld [vmem:[#allocation5] sm:$0xf]
    %v62 = vld [vmem:[#allocation5 + $0x4] sm:$0xf]
    %v63 = vld [vmem:[%s5] sm:$0x1]
    %v65 = vlaneseq
    %v66 = vshrl.u32 %v65, 7
    %v67 = vsub.s32 0, %v66
    %v68 = vrot.slane %v63, %v67
    %v72 = vunpack.c.l.b16 %v61
    %v73 = vunpack.c.l.b16 %v62
    %v74 = vpack.c.b16 %v73, %v72
    %vm76 = vcmask 130048
    %v78 = vsel %vm76, %v60, 0
    %80 = vmatprep.subr.bf16.mxu0 0
    %81 = vmatpush1.bf16.msra.mxu0 %v74
    %82 = vmatprep.subr.bf16.mxu0 0
    %83 = vmatpush1.bf16.msra.mxu0 0
    %84 = vmatprep.subr.bf16.mxu0 0
    %85 = vmatpush1.bf16.msra.mxu0 0
    %86 = vmatprep.subr.bf16.mxu0 0
    %87 = vmatpush1.bf16.msra.mxu0 0
    %88 = vmatprep.subr.bf16.mxu0 0
    %89 = vmatpush1.bf16.msra.mxu0 0
    %90 = vmatprep.subr.bf16.mxu0 0
    %91 = vmatpush1.bf16.msra.mxu0 0
    %92 = vmatprep.subr.bf16.mxu0 0
    %93 = vmatpush1.bf16.msra.mxu0 0
    %94 = vmatprep.subr.bf16.mxu0 0
    %95 = vmatpush1.bf16.msra.mxu0 0
    %96 = vmatprep.subr.bf16.mxu0 0
    %97 = vmatpush1.bf16.msra.mxu0 0
    %98 = vmatprep.subr.bf16.mxu0 0
    %99 = vmatpush1.bf16.msra.mxu0 0
    %100 = vmatprep.subr.bf16.mxu0 0
    %101 = vmatpush1.bf16.msra.mxu0 0
    %102 = vmatprep.subr.bf16.mxu0 0
    %103 = vmatpush1.bf16.msra.mxu0 0
    %104 = vmatprep.subr.bf16.mxu0 0
    %105 = vmatpush1.bf16.msra.mxu0 0
    %106 = vmatprep.subr.bf16.mxu0 0
    %107 = vmatpush1.bf16.msra.mxu0 0
    %108 = vmatprep.subr.bf16.mxu0 0
    %109 = vmatpush1.bf16.msra.mxu0 0
    %110 = vmatprep.subr.bf16.mxu0 0
    %111 = vmatpush1.bf16.msra.mxu0 0
    %112 = vmatprep.mubr.bf16.mxu0 0
    %113 = vmatmul.mubr.bf16.gmra.mrb[0].mxu0 %v78
    %v114 = vpop.f32.mrb[0].mxu0
    %v115 = vadd.f32 %v68, %v114
    %v116 = vpop.f32.mrb[0].mxu0
    %v117 = vpop.f32.mrb[0].mxu0
    %v118 = vpop.f32.mrb[0].mxu0
    %119 = vdwg.mxu0
    %v120 = vtanh.pop %v115
    %v121 = vpack.c.bf16 %v120, %v120
    %v122 = vld [vmem:[%s2] sm:$0xf]
    %v123 = vld [vmem:[%s2 + $0x4] sm:$0xf]
    %v124 = vld [vmem:[%s2 + $0x8] sm:$0xf]
    %v125 = vld [vmem:[%s2 + $0xc] sm:$0xf]
    %v126 = vld [vmem:[%s6] sm:$0x1]
    %v128 = vlaneseq
    %v129 = vshrl.u32 %v128, 7
    %v130 = vsub.s32 0, %v129
    %v131 = vrot.slane %v126, %v130
    %v137 = vunpack.c.l.b16 %v122
    %v138 = vunpack.c.l.b16 %v123
    %v139 = vunpack.c.l.b16 %v124
    %v140 = vunpack.c.l.b16 %v125
    %v141 = vpack.c.b16 %v138, %v137
    %v142 = vpack.c.b16 %v140, %v139
    %vm145 = vcmask 261120
    %v147 = vsel %vm145, %v121, 0
    %149 = vmatprep.subr.bf16.mxu0 0
    %150 = vmatpush1.bf16.msra.mxu0 %v141
    %151 = vmatprep.subr.bf16.mxu0 0
    %152 = vmatpush1.bf16.msra.mxu0 %v142
    %153 = vmatprep.subr.bf16.mxu0 0
    %154 = vmatpush1.bf16.msra.mxu0 0
    %155 = vmatprep.subr.bf16.mxu0 0
    %156 = vmatpush1.bf16.msra.mxu0 0
    %157 = vmatprep.subr.bf16.mxu0 0
    %158 = vmatpush1.bf16.msra.mxu0 0
    %159 = vmatprep.subr.bf16.mxu0 0
    %160 = vmatpush1.bf16.msra.mxu0 0
    %161 = vmatprep.subr.bf16.mxu0 0
    %162 = vmatpush1.bf16.msra.mxu0 0
    %163 = vmatprep.subr.bf16.mxu0 0
    %164 = vmatpush1.bf16.msra.mxu0 0
    %165 = vmatprep.subr.bf16.mxu0 0
    %166 = vmatpush1.bf16.msra.mxu0 0
    %167 = vmatprep.subr.bf16.mxu0 0
    %168 = vmatpush1.bf16.msra.mxu0 0
    %169 = vmatprep.subr.bf16.mxu0 0
    %170 = vmatpush1.bf16.msra.mxu0 0
    %171 = vmatprep.subr.bf16.mxu0 0
    %172 = vmatpush1.bf16.msra.mxu0 0
    %173 = vmatprep.subr.bf16.mxu0 0
    %174 = vmatpush1.bf16.msra.mxu0 0
    %175 = vmatprep.subr.bf16.mxu0 0
    %176 = vmatpush1.bf16.msra.mxu0 0
    %177 = vmatprep.subr.bf16.mxu0 0
    %178 = vmatpush1.bf16.msra.mxu0 0
    %179 = vmatprep.subr.bf16.mxu0 0
    %180 = vmatpush1.bf16.msra.mxu0 0
    %181 = vmatprep.mubr.bf16.mxu0 0
    %182 = vmatmul.mubr.bf16.gmra.mrb[0].mxu0 %v147
    %v183 = vpop.f32.mrb[0].mxu0
    %v184 = vadd.f32 %v131, %v183
    %v185 = vpop.f32.mrb[0].mxu0
    %v186 = vpop.f32.mrb[0].mxu0
    %v187 = vpop.f32.mrb[0].mxu0
    %188 = vdwg.mxu0
    %v189 = vtanh.pop %v184
    %v190 = vpack.c.bf16 %v189, %v189
    %v191 = vld [vmem:[%s3] sm:$0xf]
    %v192 = vld [vmem:[%s3 + $0x4] sm:$0xf]
    %v193 = vld [vmem:[%s3 + $0x8] sm:$0xf]
    %v194 = vld [vmem:[%s3 + $0xc] sm:$0xf]
    %v195 = vld [vmem:[%s7] sm:$0x1]
    %v197 = vlaneseq
    %v198 = vshrl.u32 %v197, 7
    %v199 = vsub.s32 0, %v198
    %v200 = vrot.slane %v195, %v199
    %v206 = vunpack.c.l.b16 %v191
    %v207 = vunpack.c.l.b16 %v192
    %v208 = vunpack.c.l.b16 %v193
    %v209 = vunpack.c.l.b16 %v194
    %v210 = vpack.c.b16 %v207, %v206
    %v211 = vpack.c.b16 %v209, %v208
    %v215 = vsel %vm145, %v190, 0
    %217 = vmatprep.subr.bf16.mxu0 0
    %218 = vmatpush1.bf16.msra.mxu0 %v210
    %219 = vmatprep.subr.bf16.mxu0 0
    %220 = vmatpush1.bf16.msra.mxu0 %v211
    %221 = vmatprep.subr.bf16.mxu0 0
    %222 = vmatpush1.bf16.msra.mxu0 0
    %223 = vmatprep.subr.bf16.mxu0 0
    %224 = vmatpush1.bf16.msra.mxu0 0
    %225 = vmatprep.subr.bf16.mxu0 0
    %226 = vmatpush1.bf16.msra.mxu0 0
    %227 = vmatprep.subr.bf16.mxu0 0
    %228 = vmatpush1.bf16.msra.mxu0 0
    %229 = vmatprep.subr.bf16.mxu0 0
    %230 = vmatpush1.bf16.msra.mxu0 0
    %231 = vmatprep.subr.bf16.mxu0 0
    %232 = vmatpush1.bf16.msra.mxu0 0
    %233 = vmatprep.subr.bf16.mxu0 0
    %234 = vmatpush1.bf16.msra.mxu0 0
    %235 = vmatprep.subr.bf16.mxu0 0
    %236 = vmatpush1.bf16.msra.mxu0 0
    %237 = vmatprep.subr.bf16.mxu0 0
    %238 = vmatpush1.bf16.msra.mxu0 0
    %239 = vmatprep.subr.bf16.mxu0 0
    %240 = vmatpush1.bf16.msra.mxu0 0
    %241 = vmatprep.subr.bf16.mxu0 0
    %242 = vmatpush1.bf16.msra.mxu0 0
    %243 = vmatprep.subr.bf16.mxu0 0
    %244 = vmatpush1.bf16.msra.mxu0 0
    %245 = vmatprep.subr.bf16.mxu0 0
    %246 = vmatpush1.bf16.msra.mxu0 0
    %247 = vmatprep.subr.bf16.mxu0 0
    %248 = vmatpush1.bf16.msra.mxu0 0
    %249 = vmatprep.mubr.bf16.mxu0 0
    %250 = vmatmul.mubr.bf16.gmra.mrb[0].mxu0 %v215
    %v251 = vpop.f32.mrb[0].mxu0
    %v252 = vadd.f32 %v200, %v251
    %v253 = vpop.f32.mrb[0].mxu0
    %v254 = vpop.f32.mrb[0].mxu0
    %v255 = vpop.f32.mrb[0].mxu0
    %256 = vdwg.mxu0
    %v257 = vtanh.pop %v252
    %v258 = vpack.c.bf16 %v257, %v257
    %v259 = vld [vmem:[%s4] sm:$0xf]
    %v260 = vld [vmem:[%s4 + $0x4] sm:$0xf]
    %v261 = vld [vmem:[%s4 + $0x8] sm:$0xf]
    %v262 = vld [vmem:[%s4 + $0xc] sm:$0xf]
    %v263 = vld [vmem:[%s8] sm:$0x1]
    %v265 = vlaneseq
    %v266 = vshrl.u32 %v265, 7
    %v267 = vsub.s32 0, %v266
    %v268 = vrot.slane %v263, %v267
    %v274 = vunpack.c.l.b16 %v259
    %v275 = vunpack.c.l.b16 %v260
    %v276 = vunpack.c.l.b16 %v261
    %v277 = vunpack.c.l.b16 %v262
    %v278 = vpack.c.b16 %v275, %v274
    %v279 = vpack.c.b16 %v277, %v276
    %v283 = vsel %vm145, %v258, 0
    %285 = vmatprep.subr.bf16.mxu0 0
    %286 = vmatpush1.bf16.msra.mxu0 %v278
    %287 = vmatprep.subr.bf16.mxu0 0
    %288 = vmatpush1.bf16.msra.mxu0 %v279
    %289 = vmatprep.subr.bf16.mxu0 0
    %290 = vmatpush1.bf16.msra.mxu0 0
    %291 = vmatprep.subr.bf16.mxu0 0
    %292 = vmatpush1.bf16.msra.mxu0 0
    %293 = vmatprep.subr.bf16.mxu0 0
    %294 = vmatpush1.bf16.msra.mxu0 0
    %295 = vmatprep.subr.bf16.mxu0 0
    %296 = vmatpush1.bf16.msra.mxu0 0
    %297 = vmatprep.subr.bf16.mxu0 0
    %298 = vmatpush1.bf16.msra.mxu0 0
    %299 = vmatprep.subr.bf16.mxu0 0
    %300 = vmatpush1.bf16.msra.mxu0 0
    %301 = vmatprep.subr.bf16.mxu0 0
    %302 = vmatpush1.bf16.msra.mxu0 0
    %303 = vmatprep.subr.bf16.mxu0 0
    %304 = vmatpush1.bf16.msra.mxu0 0
    %305 = vmatprep.subr.bf16.mxu0 0
    %306 = vmatpush1.bf16.msra.mxu0 0
    %307 = vmatprep.subr.bf16.mxu0 0
    %308 = vmatpush1.bf16.msra.mxu0 0
    %309 = vmatprep.subr.bf16.mxu0 0
    %310 = vmatpush1.bf16.msra.mxu0 0
    %311 = vmatprep.subr.bf16.mxu0 0
    %312 = vmatpush1.bf16.msra.mxu0 0
    %313 = vmatprep.subr.bf16.mxu0 0
    %314 = vmatpush1.bf16.msra.mxu0 0
    %315 = vmatprep.subr.bf16.mxu0 0
    %316 = vmatpush1.bf16.msra.mxu0 0
    %317 = vmatprep.mubr.bf16.mxu0 0
    %318 = vmatmul.mubr.bf16.gmra.mrb[0].mxu0 %v283
    %v319 = vpop.f32.mrb[0].mxu0
    %v320 = vadd.f32 %v268, %v319
    %v321 = vpop.f32.mrb[0].mxu0
    %v322 = vpop.f32.mrb[0].mxu0
    %v323 = vpop.f32.mrb[0].mxu0
    %324 = vdwg.mxu0
    %325 = vst.msk [vmem:[#allocation7] sm:$0xff] %vm76, %v320
    // Predicated region
    $region46: #{tpu_custom_call.1} parent=1 // pred_check
      _
    $region47: #{tpu_custom_call.1} parent=1 // pred_check_branch
      %327 = sbr.rel (0) target = $region49
    $region48: #{tpu_custom_call.1} parent=1 // pred_region
      %s329 = ssub.s32 128, 128
      %330 = vsyncadd [#allocation4], %s329
      %s332 = sshll.u32 [#allocation7], 4
      %s333 = int_to_ptr.vmem [resolvable:$true] %s332
      %335 = dma.vmem_to_hbm [thread:$0]  %s333, 128, %s9, [#allocation4]
    $region49: #{tpu_custom_call.1} parent=1 // pred_fallthru
      _
    // Predicated region
    $region50: #{tpu_custom_call.1} parent=1 // pred_check
      _
    $region51: #{tpu_custom_call.1} parent=1 // pred_check_branch
      %337 = sbr.rel (0) target = $region53
    $region52: #{tpu_custom_call.1} parent=1 // pred_region
      %338 = dma.done [#allocation4], 128
    $region53: #{tpu_custom_call.1} parent=1 // pred_fallthru
      _
    %339 = vsyncpa [#allocation3], 1
    %340 = vsyncpa [#allocation6], 1
    %341 = vsyncpa [#allocation4], 1

</llo_original>
